<compile_context>
chip_gen: v7x
topology: tpu7x:2x2x1
jax: 0.10.0
libtpu: 0.0.40
codegen_flags: <defaults>
</compile_context>

<pallas_src>
import functools

import jax
import jax.numpy as jnp
from jax import lax
from jax.experimental import pallas as pl
from jax.experimental.pallas import tpu as pltpu


def _round_up(x, m):
    return (x + m - 1) // m * m


def actor_kernel(x_ref, slab_ref, out_ref, *,
                 state_dim, s16, h_pad, a_pad, action_dim):
    # x_ref:    (tm, state_dim) f32 activation row-tile
    # slab_ref: (rows, L)       bf16 packed params, resident across grid steps
    # out_ref:  (tm, a_pad)     f32 lane-dense softmax output
    x = x_ref[...].astype(jnp.bfloat16)

    # Ref-level static slices into the packed parameter slab (no full-slab
    # value load).  All region offsets are multiples of 16 rows (bf16 packing).
    off = 0
    w1 = slab_ref[off:off + state_dim, :h_pad]; off += s16
    b1 = slab_ref[off:off + 1, :h_pad];         off += 16
    w2 = slab_ref[off:off + h_pad, :h_pad];     off += h_pad
    b2 = slab_ref[off:off + 1, :h_pad];         off += 16
    w3 = slab_ref[off:off + h_pad, :a_pad];     off += h_pad
    b3 = slab_ref[off:off + 1, :a_pad]

    # Layer 1 + ReLU (bf16 MXU matmul, f32 accumulation).
    h1 = jnp.dot(x, w1, preferred_element_type=jnp.float32) + b1.astype(jnp.float32)
    h1 = jnp.maximum(h1, 0.0).astype(jnp.bfloat16)

    # Layer 2 + ReLU.
    h2 = jnp.dot(h1, w2, preferred_element_type=jnp.float32) + b2.astype(jnp.float32)
    h2 = jnp.maximum(h2, 0.0).astype(jnp.bfloat16)

    # Layer 3 logits into the lane-padded action width.
    logits = jnp.dot(h2, w3, preferred_element_type=jnp.float32) + b3.astype(jnp.float32)

    # Mask padded action lanes so they vanish under softmax.
    col = lax.broadcasted_iota(jnp.int32, logits.shape, 1)
    logits = jnp.where(col < action_dim, logits, jnp.float32(-1e30))

    # Numerically stable softmax with an EXACT divide so rows sum to 1.
    m = jnp.max(logits, axis=-1, keepdims=True)
    e = jnp.exp(logits - m)
    s = jnp.sum(e, axis=-1, keepdims=True)
    out_ref[...] = (e / s).astype(out_ref.dtype)


def pack_actor_params(params):
    """Pack (w1,b1,w2,b2,w3,b3) ONCE into a zero-padded bf16 (rows, L) slab.

    Call this only when the parameters change; pass the result to
    actor_forward.  All regions start at 16-row-aligned offsets (bf16 sublane
    packing requirement)."""
    w1, b1, w2, b2, w3, b3 = params
    state_dim, hidden = w1.shape
    action_dim = w3.shape[1]

    s16 = _round_up(state_dim, 16)
    h_pad = _round_up(hidden, 128)
    a_pad = _round_up(action_dim, 128)
    L = max(h_pad, a_pad)
    rows = s16 + 16 + h_pad + 16 + h_pad + 16

    slab = jnp.zeros((rows, L), jnp.bfloat16)
    off = 0
    slab = slab.at[off:off + state_dim, :hidden].set(w1.astype(jnp.bfloat16)); off += s16
    slab = slab.at[off, :hidden].set(b1.reshape(-1).astype(jnp.bfloat16));     off += 16
    slab = slab.at[off:off + hidden, :hidden].set(w2.astype(jnp.bfloat16));    off += h_pad
    slab = slab.at[off, :hidden].set(b2.reshape(-1).astype(jnp.bfloat16));     off += 16
    slab = slab.at[off:off + hidden, :action_dim].set(w3.astype(jnp.bfloat16)); off += h_pad
    slab = slab.at[off, :action_dim].set(b3.reshape(-1).astype(jnp.bfloat16))

    meta = dict(state_dim=state_dim, hidden=hidden, action_dim=action_dim,
                s16=s16, h_pad=h_pad, a_pad=a_pad)
    return slab, meta


def actor_forward(x, slab, *, meta, block_m=256):
    batch = x.shape[0]
    state_dim = meta["state_dim"]
    s16 = meta["s16"]
    h_pad = meta["h_pad"]
    a_pad = meta["a_pad"]
    action_dim = meta["action_dim"]

    # Row-tile size: big tiles amortize per-step overhead on single-TC
    # v5e/v6e, but keep >= 2 grid steps when there is enough work so both
    # v7x TensorCores are used.
    tm = min(block_m, _round_up(batch, 8))
    if batch >= 256 and pl.cdiv(batch, tm) < 2:
        tm = _round_up(pl.cdiv(batch, 2), 8)
    grid = (pl.cdiv(batch, tm),)

    kernel = functools.partial(
        actor_kernel, state_dim=state_dim, s16=s16,
        h_pad=h_pad, a_pad=a_pad, action_dim=action_dim)

    flops = 2 * batch * (state_dim * h_pad + h_pad * h_pad + h_pad * a_pad)
    bytes_accessed = (x.size * x.dtype.itemsize
                      + slab.size * slab.dtype.itemsize
                      + batch * a_pad * 4)

    out = pl.pallas_call(
        kernel,
        out_shape=jax.ShapeDtypeStruct((batch, a_pad), jnp.float32),
        grid_spec=pltpu.PrefetchScalarGridSpec(
            num_scalar_prefetch=0,
            grid=grid,
            in_specs=[
                pl.BlockSpec((tm, state_dim), lambda i: (i, 0)),   # x row-tile
                # Constant index_map -> slab fetched once, resident in VMEM.
                # (optional: pipeline_mode=pl.Buffered(1) to skip the second
                #  double-buffer copy of the ~80 KiB slab)
                pl.BlockSpec(slab.shape, lambda i: (0, 0)),
            ],
            out_specs=pl.BlockSpec((tm, a_pad), lambda i: (i, 0)),  # lane-dense
        ),
        compiler_params=pltpu.CompilerParams(
            dimension_semantics=("parallel",)),
        cost_estimate=pl.CostEstimate(
            flops=flops,
            transcendentals=batch * a_pad,
            bytes_accessed=bytes_accessed),
    )(x, slab)

    # Drop padded action lanes (skip this slice if the consumer accepts the
    # lane-padded (batch, a_pad) block).
    return out[:, :action_dim]


def init_params(key, state_dim, action_dim, hidden_size):
    # Deterministic synthetic init (uniform, like PyTorch's default 1/sqrt(fan_in)).
    keys = jax.random.split(key, 6)

    def lin(kw, kb, fan_in, fan_out):
        bound = 1.0 / jnp.sqrt(fan_in)
        w = jax.random.uniform(kw, (fan_in, fan_out), jnp.float32, -bound, bound)
        b = jax.random.uniform(kb, (1, fan_out), jnp.float32, -bound, bound)
        return w, b

    w1, b1 = lin(keys[0], keys[1], state_dim, hidden_size)
    w2, b2 = lin(keys[2], keys[3], hidden_size, hidden_size)
    w3, b3 = lin(keys[4], keys[5], hidden_size, action_dim)
    return (w1, b1, w2, b2, w3, b3)


if __name__ == "__main__":
    # Shapes consistent with the Actor module (hidden_size defaults to 128);
    # batch=256 exercises the parallel batch grid (2 tiles of 128).
    batch = 256
    state_dim = 8
    action_dim = 4
    hidden_size = 128

    key = jax.random.PRNGKey(0)
    k_x, k_p = jax.random.split(key)
    x = jax.random.normal(k_x, (batch, state_dim), dtype=jnp.float32)
    params = init_params(k_p, state_dim, action_dim, hidden_size)

    # Pack parameters ONCE (hoisted out of the per-call forward path).
    slab, meta = pack_actor_params(params)
    fwd = jax.jit(functools.partial(actor_forward, meta=meta))

    out = jax.block_until_ready(fwd(x, slab))

    # Reference 1: same bf16-weight / f32-accumulate recipe as the kernel.
    def ref_bf16(x, params):
        w1, b1, w2, b2, w3, b3 = params
        cast = lambda a: a.astype(jnp.bfloat16)
        h1 = jnp.maximum(
            jnp.dot(cast(x), cast(w1), preferred_element_type=jnp.float32)
            + cast(b1).astype(jnp.float32), 0.0)
        h2 = jnp.maximum(
            jnp.dot(cast(h1), cast(w2), preferred_element_type=jnp.float32)
            + cast(b2).astype(jnp.float32), 0.0)
        logits = (jnp.dot(cast(h2), cast(w3), preferred_element_type=jnp.float32)
                  + cast(b3).astype(jnp.float32))
        return jax.nn.softmax(logits, axis=-1)

    ref = ref_bf16(x, params)

    # Reference 2: pure f32 PyTorch-equivalent forward (loose tolerance: bf16 weights).
    w1, b1, w2, b2, w3, b3 = params
    h1 = jnp.maximum(x @ w1 + b1, 0.0)
    h2 = jnp.maximum(h1 @ w2 + b2, 0.0)
    ref32 = jax.nn.softmax(h2 @ w3 + b3, axis=-1)

    assert out.shape == (batch, action_dim)
    assert bool(jnp.allclose(out, ref, atol=2e-3, rtol=2e-3))
    assert bool(jnp.allclose(out, ref32, atol=5e-2, rtol=5e-2))
    # Exact softmax divide -> rows sum to 1 to f32 rounding.
    assert bool(jnp.allclose(jnp.sum(out, axis=-1), 1.0, atol=1e-4))

    print("KERNEL_OK")
</pallas_src>

<mosaic_0001>
module attributes {stable_mosaic.version = 11 : i64} {
  func.func @actor_kernel(%arg0: i32, %arg1: memref<128x8xf32, #tpu.memory_space<vmem>>, %arg2: memref<320x128xbf16, #tpu.memory_space<vmem>>, %arg3: memref<128x128xf32, #tpu.memory_space<vmem>>) attributes {dimension_semantics = [#tpu.dimension_semantics<parallel>], iteration_bounds = array<i64: 2>, scalar_prefetch = 0 : i64, scratch_operands = 0 : i64, tpu.core_type = #tpu.core_type<tc>, window_params = [{transform_indices = @transform_0, window_bounds = array<i64: 128, 8>}, {pipeline_mode = #tpu.pipeline_mode<synchronous>, transform_indices = @transform_1, window_bounds = array<i64: 320, 128>}, {transform_indices = @transform_2, window_bounds = array<i64: 128, 128>}]} {
    %c0 = arith.constant 0 : index
    %c0_0 = arith.constant 0 : index
    %0 = vector.load %arg1[%c0, %c0_0] : memref<128x8xf32, #tpu.memory_space<vmem>>, vector<128x8xf32>
    %1 = arith.truncf %0 : vector<128x8xf32> to vector<128x8xbf16>
    %c0_1 = arith.constant 0 : index
    %c0_2 = arith.constant 0 : index
    %2 = vector.load %arg2[%c0_1, %c0_2] : memref<320x128xbf16, #tpu.memory_space<vmem>>, vector<8x128xbf16>
    %c16 = arith.constant 16 : index
    %c0_3 = arith.constant 0 : index
    %3 = vector.load %arg2[%c16, %c0_3] : memref<320x128xbf16, #tpu.memory_space<vmem>>, vector<1x128xbf16>
    %c32 = arith.constant 32 : index
    %c0_4 = arith.constant 0 : index
    %4 = vector.load %arg2[%c32, %c0_4] : memref<320x128xbf16, #tpu.memory_space<vmem>>, vector<128x128xbf16>
    %c160 = arith.constant 160 : index
    %c0_5 = arith.constant 0 : index
    %5 = vector.load %arg2[%c160, %c0_5] : memref<320x128xbf16, #tpu.memory_space<vmem>>, vector<1x128xbf16>
    %c176 = arith.constant 176 : index
    %c0_6 = arith.constant 0 : index
    %6 = vector.load %arg2[%c176, %c0_6] : memref<320x128xbf16, #tpu.memory_space<vmem>>, vector<128x128xbf16>
    %c304 = arith.constant 304 : index
    %c0_7 = arith.constant 0 : index
    %7 = vector.load %arg2[%c304, %c0_7] : memref<320x128xbf16, #tpu.memory_space<vmem>>, vector<1x128xbf16>
    %cst = arith.constant dense<0.000000e+00> : vector<128x128xf32>
    %8 = tpu.matmul %1, %2, %cst {dimension_numbers = #tpu.dot_dimension_numbers<[1], [0], [0], [1], [0, 0, 1, 1], [], []>} : vector<128x8xbf16>, vector<8x128xbf16>, vector<128x128xf32> -> vector<128x128xf32>
    %9 = arith.extf %3 : vector<1x128xbf16> to vector<1x128xf32>
    %10 = vector.broadcast %9 : vector<1x128xf32> to vector<128x128xf32>
    %11 = arith.addf %8, %10 : vector<128x128xf32>
    %cst_8 = arith.constant 0.000000e+00 : f32
    %12 = vector.broadcast %cst_8 : f32 to vector<128x128xf32>
    %13 = arith.maximumf %11, %12 : vector<128x128xf32>
    %14 = arith.truncf %13 : vector<128x128xf32> to vector<128x128xbf16>
    %cst_9 = arith.constant dense<0.000000e+00> : vector<128x128xf32>
    %15 = tpu.matmul %14, %4, %cst_9 {dimension_numbers = #tpu.dot_dimension_numbers<[1], [0], [0], [1], [0, 0, 1, 1], [], []>} : vector<128x128xbf16>, vector<128x128xbf16>, vector<128x128xf32> -> vector<128x128xf32>
    %16 = arith.extf %5 : vector<1x128xbf16> to vector<1x128xf32>
    %17 = vector.broadcast %16 : vector<1x128xf32> to vector<128x128xf32>
    %18 = arith.addf %15, %17 : vector<128x128xf32>
    %cst_10 = arith.constant 0.000000e+00 : f32
    %19 = vector.broadcast %cst_10 : f32 to vector<128x128xf32>
    %20 = arith.maximumf %18, %19 : vector<128x128xf32>
    %21 = arith.truncf %20 : vector<128x128xf32> to vector<128x128xbf16>
    %cst_11 = arith.constant dense<0.000000e+00> : vector<128x128xf32>
    %22 = tpu.matmul %21, %6, %cst_11 {dimension_numbers = #tpu.dot_dimension_numbers<[1], [0], [0], [1], [0, 0, 1, 1], [], []>} : vector<128x128xbf16>, vector<128x128xbf16>, vector<128x128xf32> -> vector<128x128xf32>
    %23 = arith.extf %7 : vector<1x128xbf16> to vector<1x128xf32>
    %24 = vector.broadcast %23 : vector<1x128xf32> to vector<128x128xf32>
    %25 = arith.addf %22, %24 : vector<128x128xf32>
    %26 = tpu.iota {dimensions = array<i32: 1>} : vector<128x128xi32>
    %c4_i32 = arith.constant 4 : i32
    %27 = vector.broadcast %c4_i32 : i32 to vector<128x128xi32>
    %28 = arith.cmpi slt, %26, %27 : vector<128x128xi32>
    %cst_12 = arith.constant -1.000000e+30 : f32
    %29 = vector.broadcast %cst_12 : f32 to vector<128x128xf32>
    %30 = arith.select %28, %25, %29 : vector<128x128xi1>, vector<128x128xf32>
    %cst_13 = arith.constant dense<0xFF800000> : vector<128xf32>
    %31 = vector.multi_reduction <maximumf>, %30, %cst_13 [1] : vector<128x128xf32> to vector<128xf32>
    %32 = vector.shape_cast %31 : vector<128xf32> to vector<128x1xf32>
    %33 = vector.broadcast %32 : vector<128x1xf32> to vector<128x128xf32>
    %34 = arith.subf %30, %33 : vector<128x128xf32>
    %35 = math.exp %34 : vector<128x128xf32>
    %cst_14 = arith.constant dense<0.000000e+00> : vector<128xf32>
    %36 = vector.multi_reduction <add>, %35, %cst_14 [1] : vector<128x128xf32> to vector<128xf32>
    %37 = vector.shape_cast %36 : vector<128xf32> to vector<128x1xf32>
    %38 = vector.broadcast %37 : vector<128x1xf32> to vector<128x128xf32>
    %39 = arith.divf %35, %38 : vector<128x128xf32>
    %c0_15 = arith.constant 0 : index
    %c0_16 = arith.constant 0 : index
    %40 = vector.load %arg3[%c0_15, %c0_16] : memref<128x128xf32, #tpu.memory_space<vmem>>, vector<128x128xf32>
    tpu.vector_store %arg3[%c0_15, %c0_16], %39 {strides = array<i32>} : memref<128x128xf32, #tpu.memory_space<vmem>>, vector<128x128xf32>,
    return
  }
  func.func @transform_0(%arg0: i32) -> (i32, i32) {
    %c0_i32 = arith.constant 0 : i32
    %c0_i32_0 = arith.constant 0 : i32
    return %arg0, %c0_i32 : i32, i32
  }
  func.func @transform_1(%arg0: i32) -> (i32, i32) {
    %c0_i32 = arith.constant 0 : i32
    %c0_i32_0 = arith.constant 0 : i32
    %c0_i32_1 = arith.constant 0 : i32
    return %c0_i32, %c0_i32_0 : i32, i32
  }
  func.func @transform_2(%arg0: i32) -> (i32, i32) {
    %c0_i32 = arith.constant 0 : i32
    %c0_i32_0 = arith.constant 0 : i32
    return %arg0, %c0_i32 : i32, i32
  }
}

</mosaic_0001>

<llo_original>
// kernel: actor_forward.1
$region0: #{actor_forward.1}
  #allocation0 [shape = 'u32[]', space=smem, size = 0x4, offset = 0x4, fixed_abs, tag = 'smem constant byte address 0x4 - core index']
  #allocation1 [shape = 'u32[144,128]{1,0:T(1,128)}', space=vmem, size = 0x12000, scoped, tag = 'internal scratch']
  %s0 = inlined_call_operand.vmem [shape: f32[256,8], index: 0, kind: input, shape index: {}]
  %s1 = inlined_call_operand.vmem [shape: bf16[320,128], index: 1, kind: input, shape index: {}]
  %s2 = inlined_call_operand.vmem [shape: f32[256,128], index: 2, kind: output, shape index: {}]
  %s3 = sld [smem:[#allocation0]]
  $region41: #{actor_forward.1} parent=0
    _
  %s5 = ssub.s32 1, %s3
  %s6 = scalar_select 0, %s5, %s3
  loop: start=0, step=1, limit=4
  $region2: #{actor_forward.1} parent=0 // loop_pre_header
    _
  $region3: #{actor_forward.1} parent=0 // loop_header
    %s8 = sphi 0, %s12
    %p9 = scmp.ge.s32.totalorder %s8, 4
    %s18 = sphi 0, %s20
    %s21 = sphi 0, %s18
    %s22 = sphi 0, %s21
    %s38 = sphi 0, %s22
    %s42 = sphi 0, %s42
    %s44 = sphi 0, %s42
    %s45 = sphi 0, %s44
    %s59 = sphi 0, %s45
    %s65 = sphi 0, %s67
    %s68 = sphi 0, %s65
    %s69 = sphi 0, %s68
    %s85 = sphi 0, %s69
  $region4: #{actor_forward.1} parent=0 // loop_header_branch
    %11 = sbr.rel (%p9) target = $region8
  $region5: #{actor_forward.1} parent=0 // loop_body
    %s13 = ssub.s32 %s8, 1
    %s14 = ssub.s32 %s8, 2
    %s15 = sadd.s32 %s8, 1
    %s16 = ssub.s32 %s8, %s15
    %p17 = scmp.eq.s32.totalorder %s16, 0
    %s19 = sadd.s32 %s18, 1
    %s20 = scalar_select %p17, %s18, %s19
    %p23 = pneg %p17
    %p24 = scmp.eq.s32.totalorder %s8, 1
    %p25 = por %p23, %p24
    %p26 = scmp.ne.s32.totalorder %s18, %s21
    %p27 = scmp.eq.s32.totalorder %s8, 0
    %p28 = por %p26, %p27
    %p29 = scmp.ne.s32.totalorder %s18, %s21
    %p30 = scmp.eq.s32.totalorder %s13, 1
    %p31 = por %p29, %p30
    %p32 = scmp.ne.s32.totalorder %s21, %s22
    %p33 = scmp.eq.s32.totalorder %s13, 0
    %p34 = por %p32, %p33
    %p35 = scmp.ne.s32.totalorder %s21, %s22
    %p36 = scmp.eq.s32.totalorder %s14, 1
    %p37 = por %p35, %p36
    %p39 = scmp.ne.s32.totalorder %s22, %s38
    %p40 = scmp.eq.s32.totalorder %s14, 0
    %p41 = por %p39, %p40
    %s43 = sadd.s32 %s42, 1
    %p46 = scmp.eq.s32.totalorder %s8, 1
    %p47 = scmp.ne.s32.totalorder %s42, %s44
    %p48 = scmp.eq.s32.totalorder %s8, 0
    %p49 = por %p47, %p48
    %p50 = scmp.ne.s32.totalorder %s42, %s44
    %p51 = scmp.eq.s32.totalorder %s13, 1
    %p52 = por %p50, %p51
    %p53 = scmp.ne.s32.totalorder %s44, %s45
    %p54 = scmp.eq.s32.totalorder %s13, 0
    %p55 = por %p53, %p54
    %p56 = scmp.ne.s32.totalorder %s44, %s45
    %p57 = scmp.eq.s32.totalorder %s14, 1
    %p58 = por %p56, %p57
    %p60 = scmp.ne.s32.totalorder %s45, %s59
    %p61 = scmp.eq.s32.totalorder %s14, 0
    %p62 = por %p60, %p61
    %s63 = ssub.s32 %s8, %s15
    %p64 = scmp.eq.s32.totalorder %s63, 0
    %s66 = sadd.s32 %s65, 1
    %s67 = scalar_select %p64, %s65, %s66
    %p70 = pneg %p64
    %p71 = scmp.eq.s32.totalorder %s8, 1
    %p72 = por %p70, %p71
    %p73 = scmp.ne.s32.totalorder %s65, %s68
    %p74 = scmp.eq.s32.totalorder %s8, 0
    %p75 = por %p73, %p74
    %p76 = scmp.ne.s32.totalorder %s65, %s68
    %p77 = scmp.eq.s32.totalorder %s13, 1
    %p78 = por %p76, %p77
    %p79 = scmp.ne.s32.totalorder %s68, %s69
    %p80 = scmp.eq.s32.totalorder %s13, 0
    %p81 = por %p79, %p80
    %p82 = scmp.ne.s32.totalorder %s68, %s69
    %p83 = scmp.eq.s32.totalorder %s14, 1
    %p84 = por %p82, %p83
    %p86 = scmp.ne.s32.totalorder %s69, %s85
    %p87 = scmp.eq.s32.totalorder %s14, 0
    %p88 = por %p86, %p87
    %p89 = scmp.le.s32.totalorder 1, %s8
    %p90 = scmp.lt.s32.totalorder %s8, 3
    %p91 = pnand %p89, %p90
    %p92 = pneg %p91
    // Predicated region
    $region9: #{actor_forward.1} parent=5 // pred_check
      _
    $region10: #{actor_forward.1} parent=5 // pred_check_branch
      %94 = sbr.rel (%p91) target = $region12
    $region11: #{actor_forward.1} parent=5 // pred_region
      %s95 = ssub.s32 %s8, 1
      // Predicated region
      $region13: #{actor_forward.1} parent=11 // pred_check
        %p96 = pneg %p55
      $region14: #{actor_forward.1} parent=11 // pred_check_branch
        %98 = sbr.rel (%p96) target = $region16
      $region15: #{actor_forward.1} parent=11 // pred_region
        _
      $region16: #{actor_forward.1} parent=11 // pred_fallthru
        _
    $region12: #{actor_forward.1} parent=5 // pred_fallthru
      _
    %p99 = scmp.lt.s32.totalorder %s8, 2
    // Predicated region
    $region17: #{actor_forward.1} parent=5 // pred_check
      %p100 = pneg %p99
    $region18: #{actor_forward.1} parent=5 // pred_check_branch
      %102 = sbr.rel (%p100) target = $region20
    $region19: #{actor_forward.1} parent=5 // pred_region
      // Predicated region
      $region21: #{actor_forward.1} parent=19 // pred_check
        %p103 = pneg %p28
      $region22: #{actor_forward.1} parent=19 // pred_check_branch
        %105 = sbr.rel (%p103) target = $region24
      $region23: #{actor_forward.1} parent=19 // pred_region
        %s106 = smul.u32 16, %s8
        %p107 = scmp.lt.s32.totalorder %s106, 31
        %s108 = scalar_select %p107, %s106, 31
        %s109 = smul.addr %s108, 8
        %s110 = scalar_lea.vmem %s0, %s109
        %s111 = smul.u32 16, %s8
      $region24: #{actor_forward.1} parent=19 // pred_fallthru
        _
    $region20: #{actor_forward.1} parent=5 // pred_fallthru
      _
    %p112 = scmp.le.s32.totalorder 1, %s8
    %p113 = scmp.lt.s32.totalorder %s8, 3
    %p114 = pnand %p112, %p113
    %p115 = pneg %p114
    // Predicated region
    $region25: #{actor_forward.1} parent=5 // pred_check
      _
    $region26: #{actor_forward.1} parent=5 // pred_check_branch
      %117 = sbr.rel (%p114) target = $region28
    $region27: #{actor_forward.1} parent=5 // pred_region
      %s118 = ssub.s32 %s8, 1
      %s119 = smul.u32 16, %s13
      %p120 = scmp.lt.s32.totalorder %s119, 31
      %s121 = scalar_select %p120, %s119, 31
      %s122 = smul.addr %s121, 8
      %s123 = scalar_lea.vmem %s0, %s122
      %p124 = pneg %p34
      %p125 = pneg %p31
      %p126 = pneg %p55
      %p127 = pneg %p52
      %p128 = pneg %p81
      %p129 = pneg %p78
      %s130 = smul.u32 16, %s13
      %p131 = scmp.lt.s32.totalorder %s130, 31
      %s132 = scalar_select %p131, %s130, 31
      %s133 = smul.addr %s132, 8
      %s134 = scalar_lea.vmem %s2, %s133
      %s135 = smul.u32 16, %s13
      %p136 = scmp.lt.s32.totalorder %s135, 31
      %s137 = scalar_select %p136, %s135, 31
      %s138 = smul.addr %s137, 8
      %s139 = scalar_lea.vmem %s0, %s138
      %s140 = smul.u32 16, %s13
      %s141 = smul.u32 16, %s13
      %p142 = scmp.lt.s32.totalorder %s141, 31
      %s143 = scalar_select %p142, %s141, 31
      %s144 = smul.addr %s143, 8
      %s145 = scalar_lea.vmem %s2, %s144
      %s146 = smul.u32 16, %s13
      %v148 = vld [vmem:[%s139] sm:$0xff]
      %v149 = vld [vmem:[%s139 + $0x8] sm:$0xff]
      %v150 = vld [vmem:[%s139 + $0x10] sm:$0xff]
      %v151 = vld [vmem:[%s139 + $0x18] sm:$0xff]
      %v152 = vld [vmem:[%s139 + $0x20] sm:$0xff]
      %v153 = vld [vmem:[%s139 + $0x28] sm:$0xff]
      %v154 = vld [vmem:[%s139 + $0x30] sm:$0xff]
      %v155 = vld [vmem:[%s139 + $0x38] sm:$0xff]
      %v156 = vld [vmem:[%s139 + $0x40] sm:$0xff]
      %v157 = vld [vmem:[%s139 + $0x48] sm:$0xff]
      %v158 = vld [vmem:[%s139 + $0x50] sm:$0xff]
      %v159 = vld [vmem:[%s139 + $0x58] sm:$0xff]
      %v160 = vld [vmem:[%s139 + $0x60] sm:$0xff]
      %v161 = vld [vmem:[%s139 + $0x68] sm:$0xff]
      %v162 = vld [vmem:[%s139 + $0x70] sm:$0xff]
      %v163 = vld [vmem:[%s139 + $0x78] sm:$0xff]
      %v164 = vpack.c.bf16 %v149, %v148
      %v165 = vpack.c.bf16 %v151, %v150
      %v166 = vpack.c.bf16 %v153, %v152
      %v167 = vpack.c.bf16 %v155, %v154
      %v168 = vpack.c.bf16 %v157, %v156
      %v169 = vpack.c.bf16 %v159, %v158
      %v170 = vpack.c.bf16 %v161, %v160
      %v171 = vpack.c.bf16 %v163, %v162
      %v172 = vld [vmem:[%s1] sm:$0xf]
      %v173 = vld [vmem:[%s1 + $0x8] sm:$0x1]
      %v174 = vld [vmem:[%s1 + $0x10] sm:$0xf]
      %v175 = vld [vmem:[%s1 + $0x14] sm:$0xf]
      %v176 = vld [vmem:[%s1 + $0x18] sm:$0xf]
      %v177 = vld [vmem:[%s1 + $0x1c] sm:$0xf]
      %v178 = vld [vmem:[%s1 + $0x20] sm:$0xf]
      %v179 = vld [vmem:[%s1 + $0x24] sm:$0xf]
      %v180 = vld [vmem:[%s1 + $0x28] sm:$0xf]
      %v181 = vld [vmem:[%s1 + $0x2c] sm:$0xf]
      %v182 = vld [vmem:[%s1 + $0x30] sm:$0xf]
      %v183 = vld [vmem:[%s1 + $0x34] sm:$0xf]
      %v184 = vld [vmem:[%s1 + $0x38] sm:$0xf]
      %v185 = vld [vmem:[%s1 + $0x3c] sm:$0xf]
      %v186 = vld [vmem:[%s1 + $0x40] sm:$0xf]
      %v187 = vld [vmem:[%s1 + $0x44] sm:$0xf]
      %v188 = vld [vmem:[%s1 + $0x48] sm:$0xf]
      %v189 = vld [vmem:[%s1 + $0x4c] sm:$0xf]
      %v190 = vld [vmem:[%s1 + $0x50] sm:$0x1]
      %v191 = vld [vmem:[%s1 + $0x58] sm:$0xf]
      %v192 = vld [vmem:[%s1 + $0x5c] sm:$0xf]
      %v193 = vld [vmem:[%s1 + $0x60] sm:$0xf]
      %v194 = vld [vmem:[%s1 + $0x64] sm:$0xf]
      %v195 = vld [vmem:[%s1 + $0x68] sm:$0xf]
      %v196 = vld [vmem:[%s1 + $0x6c] sm:$0xf]
      %v197 = vld [vmem:[%s1 + $0x70] sm:$0xf]
      %v198 = vld [vmem:[%s1 + $0x74] sm:$0xf]
      %v199 = vld [vmem:[%s1 + $0x78] sm:$0xf]
      %v200 = vld [vmem:[%s1 + $0x7c] sm:$0xf]
      %v201 = vld [vmem:[%s1 + $0x80] sm:$0xf]
      %v202 = vld [vmem:[%s1 + $0x84] sm:$0xf]
      %v203 = vld [vmem:[%s1 + $0x88] sm:$0xf]
      %v204 = vld [vmem:[%s1 + $0x8c] sm:$0xf]
      %v205 = vld [vmem:[%s1 + $0x90] sm:$0xf]
      %v206 = vld [vmem:[%s1 + $0x94] sm:$0xf]
      %v207 = vld [vmem:[%s1 + $0x98] sm:$0x1]
      %v208 = vunpack.c.l.bf16 %v173
      %v209 = vlaneseq
      %v210 = vshrl.u32 %v209, 7
      %v211 = vsub.s32 0, %v210
      %v212 = vrot.slane %v208, %v211
      %vm213 = vcmask 64512
      %v215 = vsel %vm213, %v164, 0
      %v218 = vsel %vm213, %v165, 0
      %v221 = vsel %vm213, %v166, 0
      %v224 = vsel %vm213, %v167, 0
      %v227 = vsel %vm213, %v168, 0
      %v230 = vsel %vm213, %v169, 0
      %v233 = vsel %vm213, %v170, 0
      %v236 = vsel %vm213, %v171, 0
      %vm238 = vcmask 1043456
      %v240 = vsel %vm238, %v172, 0
      %242 = vmatprep.subr.bf16.mxu0 0
      %243 = vmatpush1.bf16.msra.mxu0 %v240
      %244 = vmatprep.subr.bf16.mxu0 0
      %245 = vmatpush1.bf16.msra.mxu0 0
      %246 = vmatprep.subr.bf16.mxu0 0
      %247 = vmatpush1.bf16.msra.mxu0 0
      %248 = vmatprep.subr.bf16.mxu0 0
      %249 = vmatpush1.bf16.msra.mxu0 0
      %250 = vmatprep.subr.bf16.mxu0 0
      %251 = vmatpush1.bf16.msra.mxu0 0
      %252 = vmatprep.subr.bf16.mxu0 0
      %253 = vmatpush1.bf16.msra.mxu0 0
      %254 = vmatprep.subr.bf16.mxu0 0
      %255 = vmatpush1.bf16.msra.mxu0 0
      %256 = vmatprep.subr.bf16.mxu0 0
      %257 = vmatpush1.bf16.msra.mxu0 0
      %258 = vmatprep.subr.bf16.mxu0 0
      %259 = vmatpush1.bf16.msra.mxu0 0
      %260 = vmatprep.subr.bf16.mxu0 0
      %261 = vmatpush1.bf16.msra.mxu0 0
      %262 = vmatprep.subr.bf16.mxu0 0
      %263 = vmatpush1.bf16.msra.mxu0 0
      %264 = vmatprep.subr.bf16.mxu0 0
      %265 = vmatpush1.bf16.msra.mxu0 0
      %266 = vmatprep.subr.bf16.mxu0 0
      %267 = vmatpush1.bf16.msra.mxu0 0
      %268 = vmatprep.subr.bf16.mxu0 0
      %269 = vmatpush1.bf16.msra.mxu0 0
      %270 = vmatprep.subr.bf16.mxu0 0
      %271 = vmatpush1.bf16.msra.mxu0 0
      %272 = vmatprep.subr.bf16.mxu0 0
      %273 = vmatpush1.bf16.msra.mxu0 0
      %274 = vmatprep.mubr.bf16.mxu0 0
      %275 = vmatmul.mubr.bf16.gmra.mrb[0].mxu0 %v215
      %v276 = vpop.f32.mrb[0].mxu0
      %v277 = vadd.f32 %v212, %v276
      %v278 = vpop.f32.mrb[0].mxu0
      %v279 = vpop.f32.mrb[0].mxu0
      %v280 = vadd.f32 %v212, %v279
      %v281 = vpop.f32.mrb[0].mxu0
      %282 = vmatprep.mubr.bf16.mxu0 0
      %283 = vmatmul.mubr.bf16.gmra.mrb[0].mxu0 %v218
      %v284 = vpop.f32.mrb[0].mxu0
      %v285 = vadd.f32 %v212, %v284
      %v286 = vpop.f32.mrb[0].mxu0
      %v287 = vpop.f32.mrb[0].mxu0
      %v288 = vadd.f32 %v212, %v287
      %v289 = vpop.f32.mrb[0].mxu0
      %290 = vmatprep.mubr.bf16.mxu0 0
      %291 = vmatmul.mubr.bf16.gmra.mrb[0].mxu0 %v221
      %v292 = vpop.f32.mrb[0].mxu0
      %v293 = vadd.f32 %v212, %v292
      %v294 = vpop.f32.mrb[0].mxu0
      %v295 = vpop.f32.mrb[0].mxu0
      %v296 = vadd.f32 %v212, %v295
      %v297 = vpop.f32.mrb[0].mxu0
      %298 = vmatprep.mubr.bf16.mxu0 0
      %299 = vmatmul.mubr.bf16.gmra.mrb[0].mxu0 %v224
      %v300 = vpop.f32.mrb[0].mxu0
      %v301 = vadd.f32 %v212, %v300
      %v302 = vpop.f32.mrb[0].mxu0
      %v303 = vpop.f32.mrb[0].mxu0
      %v304 = vadd.f32 %v212, %v303
      %v305 = vpop.f32.mrb[0].mxu0
      %306 = vmatprep.mubr.bf16.mxu0 0
      %307 = vmatmul.mubr.bf16.gmra.mrb[0].mxu0 %v227
      %v308 = vpop.f32.mrb[0].mxu0
      %v309 = vadd.f32 %v212, %v308
      %v310 = vpop.f32.mrb[0].mxu0
      %v311 = vpop.f32.mrb[0].mxu0
      %v312 = vadd.f32 %v212, %v311
      %v313 = vpop.f32.mrb[0].mxu0
      %314 = vmatprep.mubr.bf16.mxu0 0
      %315 = vmatmul.mubr.bf16.gmra.mrb[0].mxu0 %v230
      %v316 = vpop.f32.mrb[0].mxu0
      %v317 = vadd.f32 %v212, %v316
      %v318 = vpop.f32.mrb[0].mxu0
      %v319 = vpop.f32.mrb[0].mxu0
      %v320 = vadd.f32 %v212, %v319
      %v321 = vpop.f32.mrb[0].mxu0
      %322 = vmatprep.mubr.bf16.mxu0 0
      %323 = vmatmul.mubr.bf16.gmra.mrb[0].mxu0 %v233
      %v324 = vpop.f32.mrb[0].mxu0
      %v325 = vadd.f32 %v212, %v324
      %v326 = vpop.f32.mrb[0].mxu0
      %v327 = vpop.f32.mrb[0].mxu0
      %v328 = vadd.f32 %v212, %v327
      %v329 = vpop.f32.mrb[0].mxu0
      %330 = vmatprep.mubr.bf16.mxu0 0
      %331 = vmatmul.mubr.bf16.gmra.mrb[0].mxu0 %v236
      %v332 = vpop.f32.mrb[0].mxu0
      %v333 = vadd.f32 %v212, %v332
      %v334 = vpop.f32.mrb[0].mxu0
      %v335 = vpop.f32.mrb[0].mxu0
      %v336 = vadd.f32 %v212, %v335
      %v337 = vpop.f32.mrb[0].mxu0
      %338 = vdwg.mxu0
      %v339 = vmax.f32 %v277, 0.0
      %v340 = vmax.f32 %v280, 0.0
      %v341 = vmax.f32 %v285, 0.0
      %v342 = vmax.f32 %v288, 0.0
      %v343 = vmax.f32 %v293, 0.0
      %v344 = vmax.f32 %v296, 0.0
      %v345 = vmax.f32 %v301, 0.0
      %v346 = vmax.f32 %v304, 0.0
      %v347 = vmax.f32 %v309, 0.0
      %v348 = vmax.f32 %v312, 0.0
      %v349 = vmax.f32 %v317, 0.0
      %v350 = vmax.f32 %v320, 0.0
      %v351 = vmax.f32 %v325, 0.0
      %v352 = vmax.f32 %v328, 0.0
      %v353 = vmax.f32 %v333, 0.0
      %v354 = vmax.f32 %v336, 0.0
      %v355 = vpack.c.bf16 %v340, %v339
      %v356 = vpack.c.bf16 %v342, %v341
      %v357 = vpack.c.bf16 %v344, %v343
      %v358 = vpack.c.bf16 %v346, %v345
      %v359 = vpack.c.bf16 %v348, %v347
      %v360 = vpack.c.bf16 %v350, %v349
      %v361 = vpack.c.bf16 %v352, %v351
      %v362 = vpack.c.bf16 %v354, %v353
      %v363 = vunpack.c.l.bf16 %v190
      %v364 = vlaneseq
      %v365 = vshrl.u32 %v364, 7
      %v366 = vsub.s32 0, %v365
      %v367 = vrot.slane %v363, %v366
      %v384 = vunpack.c.l.b16 %v174
      %v385 = vunpack.c.l.b16 %v175
      %v386 = vunpack.c.l.b16 %v176
      %v387 = vunpack.c.l.b16 %v177
      %v388 = vunpack.c.l.b16 %v178
      %v389 = vunpack.c.l.b16 %v179
      %v390 = vunpack.c.l.b16 %v180
      %v391 = vunpack.c.l.b16 %v181
      %v392 = vunpack.c.l.b16 %v182
      %v393 = vunpack.c.l.b16 %v183
      %v394 = vunpack.c.l.b16 %v184
      %v395 = vunpack.c.l.b16 %v185
      %v396 = vunpack.c.l.b16 %v186
      %v397 = vunpack.c.l.b16 %v187
      %v398 = vunpack.c.l.b16 %v188
      %v399 = vunpack.c.l.b16 %v189
      %v400 = vpack.c.b16 %v385, %v384
      %v401 = vpack.c.b16 %v387, %v386
      %v402 = vpack.c.b16 %v389, %v388
      %v403 = vpack.c.b16 %v391, %v390
      %v404 = vpack.c.b16 %v393, %v392
      %v405 = vpack.c.b16 %v395, %v394
      %v406 = vpack.c.b16 %v397, %v396
      %v407 = vpack.c.b16 %v399, %v398
      %416 = vmatprep.subr.bf16.mxu0 0
      %417 = vmatpush1.bf16.msra.mxu0 %v400
      %418 = vmatprep.subr.bf16.mxu0 0
      %419 = vmatpush1.bf16.msra.mxu0 %v401
      %420 = vmatprep.subr.bf16.mxu0 0
      %421 = vmatpush1.bf16.msra.mxu0 %v402
      %422 = vmatprep.subr.bf16.mxu0 0
      %423 = vmatpush1.bf16.msra.mxu0 %v403
      %424 = vmatprep.subr.bf16.mxu0 0
      %425 = vmatpush1.bf16.msra.mxu0 %v404
      %426 = vmatprep.subr.bf16.mxu0 0
      %427 = vmatpush1.bf16.msra.mxu0 %v405
      %428 = vmatprep.subr.bf16.mxu0 0
      %429 = vmatpush1.bf16.msra.mxu0 %v406
      %430 = vmatprep.subr.bf16.mxu0 0
      %431 = vmatpush1.bf16.msra.mxu0 %v407
      %432 = vmatprep.subr.bf16.mxu0 0
      %433 = vmatpush1.bf16.msra.mxu0 0
      %434 = vmatprep.subr.bf16.mxu0 0
      %435 = vmatpush1.bf16.msra.mxu0 0
      %436 = vmatprep.subr.bf16.mxu0 0
      %437 = vmatpush1.bf16.msra.mxu0 0
      %438 = vmatprep.subr.bf16.mxu0 0
      %439 = vmatpush1.bf16.msra.mxu0 0
      %440 = vmatprep.subr.bf16.mxu0 0
      %441 = vmatpush1.bf16.msra.mxu0 0
      %442 = vmatprep.subr.bf16.mxu0 0
      %443 = vmatpush1.bf16.msra.mxu0 0
      %444 = vmatprep.subr.bf16.mxu0 0
      %445 = vmatpush1.bf16.msra.mxu0 0
      %446 = vmatprep.subr.bf16.mxu0 0
      %447 = vmatpush1.bf16.msra.mxu0 0
      %448 = vmatprep.mubr.bf16.mxu0 0
      %449 = vmatmul.mubr.bf16.gmra.mrb[0].mxu0 %v355
      %v450 = vpop.f32.mrb[0].mxu0
      %v451 = vadd.f32 %v367, %v450
      %v452 = vpop.f32.mrb[0].mxu0
      %v453 = vpop.f32.mrb[0].mxu0
      %v454 = vadd.f32 %v367, %v453
      %v455 = vpop.f32.mrb[0].mxu0
      %456 = vmatprep.mubr.bf16.mxu0 0
      %457 = vmatmul.mubr.bf16.gmra.mrb[0].mxu0 %v356
      %v458 = vpop.f32.mrb[0].mxu0
      %v459 = vadd.f32 %v367, %v458
      %v460 = vpop.f32.mrb[0].mxu0
      %v461 = vpop.f32.mrb[0].mxu0
      %v462 = vadd.f32 %v367, %v461
      %v463 = vpop.f32.mrb[0].mxu0
      %464 = vmatprep.mubr.bf16.mxu0 0
      %465 = vmatmul.mubr.bf16.gmra.mrb[0].mxu0 %v357
      %v466 = vpop.f32.mrb[0].mxu0
      %v467 = vadd.f32 %v367, %v466
      %v468 = vpop.f32.mrb[0].mxu0
      %v469 = vpop.f32.mrb[0].mxu0
      %v470 = vadd.f32 %v367, %v469
      %v471 = vpop.f32.mrb[0].mxu0
      %472 = vmatprep.mubr.bf16.mxu0 0
      %473 = vmatmul.mubr.bf16.gmra.mrb[0].mxu0 %v358
      %v474 = vpop.f32.mrb[0].mxu0
      %v475 = vadd.f32 %v367, %v474
      %v476 = vpop.f32.mrb[0].mxu0
      %v477 = vpop.f32.mrb[0].mxu0
      %v478 = vadd.f32 %v367, %v477
      %v479 = vpop.f32.mrb[0].mxu0
      %480 = vmatprep.mubr.bf16.mxu0 0
      %481 = vmatmul.mubr.bf16.gmra.mrb[0].mxu0 %v359
      %v482 = vpop.f32.mrb[0].mxu0
      %v483 = vadd.f32 %v367, %v482
      %v484 = vpop.f32.mrb[0].mxu0
      %v485 = vpop.f32.mrb[0].mxu0
      %v486 = vadd.f32 %v367, %v485
      %v487 = vpop.f32.mrb[0].mxu0
      %488 = vmatprep.mubr.bf16.mxu0 0
      %489 = vmatmul.mubr.bf16.gmra.mrb[0].mxu0 %v360
      %v490 = vpop.f32.mrb[0].mxu0
      %v491 = vadd.f32 %v367, %v490
      %v492 = vpop.f32.mrb[0].mxu0
      %v493 = vpop.f32.mrb[0].mxu0
      %v494 = vadd.f32 %v367, %v493
      %v495 = vpop.f32.mrb[0].mxu0
      %496 = vmatprep.mubr.bf16.mxu0 0
      %497 = vmatmul.mubr.bf16.gmra.mrb[0].mxu0 %v361
      %v498 = vpop.f32.mrb[0].mxu0
      %v499 = vadd.f32 %v367, %v498
      %v500 = vpop.f32.mrb[0].mxu0
      %v501 = vpop.f32.mrb[0].mxu0
      %v502 = vadd.f32 %v367, %v501
      %v503 = vpop.f32.mrb[0].mxu0
      %504 = vmatprep.mubr.bf16.mxu0 0
      %505 = vmatmul.mubr.bf16.gmra.mrb[0].mxu0 %v362
      %v506 = vpop.f32.mrb[0].mxu0
      %v507 = vadd.f32 %v367, %v506
      %v508 = vpop.f32.mrb[0].mxu0
      %v509 = vpop.f32.mrb[0].mxu0
      %v510 = vadd.f32 %v367, %v509
      %v511 = vpop.f32.mrb[0].mxu0
      %512 = vdwg.mxu0
      %v513 = vmax.f32 %v451, 0.0
      %v514 = vmax.f32 %v454, 0.0
      %v515 = vmax.f32 %v459, 0.0
      %v516 = vmax.f32 %v462, 0.0
      %v517 = vmax.f32 %v467, 0.0
      %v518 = vmax.f32 %v470, 0.0
      %v519 = vmax.f32 %v475, 0.0
      %v520 = vmax.f32 %v478, 0.0
      %v521 = vmax.f32 %v483, 0.0
      %v522 = vmax.f32 %v486, 0.0
      %v523 = vmax.f32 %v491, 0.0
      %v524 = vmax.f32 %v494, 0.0
      %v525 = vmax.f32 %v499, 0.0
      %v526 = vmax.f32 %v502, 0.0
      %v527 = vmax.f32 %v507, 0.0
      %v528 = vmax.f32 %v510, 0.0
      %v529 = vpack.c.bf16 %v514, %v513
      %v530 = vpack.c.bf16 %v516, %v515
      %v531 = vpack.c.bf16 %v518, %v517
      %v532 = vpack.c.bf16 %v520, %v519
      %v533 = vpack.c.bf16 %v522, %v521
      %v534 = vpack.c.bf16 %v524, %v523
      %v535 = vpack.c.bf16 %v526, %v525
      %v536 = vpack.c.bf16 %v528, %v527
      %v537 = vunpack.c.l.bf16 %v207
      %v538 = vlaneseq
      %v539 = vshrl.u32 %v538, 7
      %v540 = vsub.s32 0, %v539
      %v541 = vrot.slane %v537, %v540
      %v558 = vunpack.c.l.b16 %v191
      %v559 = vunpack.c.l.b16 %v192
      %v560 = vunpack.c.l.b16 %v193
      %v561 = vunpack.c.l.b16 %v194
      %v562 = vunpack.c.l.b16 %v195
      %v563 = vunpack.c.l.b16 %v196
      %v564 = vunpack.c.l.b16 %v197
      %v565 = vunpack.c.l.b16 %v198
      %v566 = vunpack.c.l.b16 %v199
      %v567 = vunpack.c.l.b16 %v200
      %v568 = vunpack.c.l.b16 %v201
      %v569 = vunpack.c.l.b16 %v202
      %v570 = vunpack.c.l.b16 %v203
      %v571 = vunpack.c.l.b16 %v204
      %v572 = vunpack.c.l.b16 %v205
      %v573 = vunpack.c.l.b16 %v206
      %v574 = vpack.c.b16 %v559, %v558
      %v575 = vpack.c.b16 %v561, %v560
      %v576 = vpack.c.b16 %v563, %v562
      %v577 = vpack.c.b16 %v565, %v564
      %v578 = vpack.c.b16 %v567, %v566
      %v579 = vpack.c.b16 %v569, %v568
      %v580 = vpack.c.b16 %v571, %v570
      %v581 = vpack.c.b16 %v573, %v572
      %590 = vmatprep.subr.bf16.mxu0 0
      %591 = vmatpush1.bf16.msra.mxu0 %v574
      %592 = vmatprep.subr.bf16.mxu0 0
      %593 = vmatpush1.bf16.msra.mxu0 %v575
      %594 = vmatprep.subr.bf16.mxu0 0
      %595 = vmatpush1.bf16.msra.mxu0 %v576
      %596 = vmatprep.subr.bf16.mxu0 0
      %597 = vmatpush1.bf16.msra.mxu0 %v577
      %598 = vmatprep.subr.bf16.mxu0 0
      %599 = vmatpush1.bf16.msra.mxu0 %v578
      %600 = vmatprep.subr.bf16.mxu0 0
      %601 = vmatpush1.bf16.msra.mxu0 %v579
      %602 = vmatprep.subr.bf16.mxu0 0
      %603 = vmatpush1.bf16.msra.mxu0 %v580
      %604 = vmatprep.subr.bf16.mxu0 0
      %605 = vmatpush1.bf16.msra.mxu0 %v581
      %606 = vmatprep.subr.bf16.mxu0 0
      %607 = vmatpush1.bf16.msra.mxu0 0
      %608 = vmatprep.subr.bf16.mxu0 0
      %609 = vmatpush1.bf16.msra.mxu0 0
      %610 = vmatprep.subr.bf16.mxu0 0
      %611 = vmatpush1.bf16.msra.mxu0 0
      %612 = vmatprep.subr.bf16.mxu0 0
      %613 = vmatpush1.bf16.msra.mxu0 0
      %614 = vmatprep.subr.bf16.mxu0 0
      %615 = vmatpush1.bf16.msra.mxu0 0
      %616 = vmatprep.subr.bf16.mxu0 0
      %617 = vmatpush1.bf16.msra.mxu0 0
      %618 = vmatprep.subr.bf16.mxu0 0
      %619 = vmatpush1.bf16.msra.mxu0 0
      %620 = vmatprep.subr.bf16.mxu0 0
      %621 = vmatpush1.bf16.msra.mxu0 0
      %622 = vmatprep.mubr.bf16.mxu0 0
      %623 = vmatmul.mubr.bf16.gmra.mrb[0].mxu0 %v529
      %v624 = vpop.f32.mrb[0].mxu0
      %v625 = vadd.f32 %v541, %v624
      %v626 = vpop.f32.mrb[0].mxu0
      %v627 = vpop.f32.mrb[0].mxu0
      %v628 = vadd.f32 %v541, %v627
      %v629 = vpop.f32.mrb[0].mxu0
      %630 = vmatprep.mubr.bf16.mxu0 0
      %631 = vmatmul.mubr.bf16.gmra.mrb[0].mxu0 %v530
      %v632 = vpop.f32.mrb[0].mxu0
      %v633 = vadd.f32 %v541, %v632
      %v634 = vpop.f32.mrb[0].mxu0
      %v635 = vpop.f32.mrb[0].mxu0
      %v636 = vadd.f32 %v541, %v635
      %v637 = vpop.f32.mrb[0].mxu0
      %638 = vmatprep.mubr.bf16.mxu0 0
      %639 = vmatmul.mubr.bf16.gmra.mrb[0].mxu0 %v531
      %v640 = vpop.f32.mrb[0].mxu0
      %v641 = vadd.f32 %v541, %v640
      %v642 = vpop.f32.mrb[0].mxu0
      %v643 = vpop.f32.mrb[0].mxu0
      %v644 = vadd.f32 %v541, %v643
      %v645 = vpop.f32.mrb[0].mxu0
      %646 = vmatprep.mubr.bf16.mxu0 0
      %647 = vmatmul.mubr.bf16.gmra.mrb[0].mxu0 %v532
      %v648 = vpop.f32.mrb[0].mxu0
      %v649 = vadd.f32 %v541, %v648
      %v650 = vpop.f32.mrb[0].mxu0
      %v651 = vpop.f32.mrb[0].mxu0
      %v652 = vadd.f32 %v541, %v651
      %v653 = vpop.f32.mrb[0].mxu0
      %654 = vmatprep.mubr.bf16.mxu0 0
      %655 = vmatmul.mubr.bf16.gmra.mrb[0].mxu0 %v533
      %v656 = vpop.f32.mrb[0].mxu0
      %v657 = vadd.f32 %v541, %v656
      %v658 = vpop.f32.mrb[0].mxu0
      %v659 = vpop.f32.mrb[0].mxu0
      %v660 = vadd.f32 %v541, %v659
      %v661 = vpop.f32.mrb[0].mxu0
      %662 = vmatprep.mubr.bf16.mxu0 0
      %663 = vmatmul.mubr.bf16.gmra.mrb[0].mxu0 %v534
      %v664 = vpop.f32.mrb[0].mxu0
      %v665 = vadd.f32 %v541, %v664
      %v666 = vpop.f32.mrb[0].mxu0
      %v667 = vpop.f32.mrb[0].mxu0
      %v668 = vadd.f32 %v541, %v667
      %v669 = vpop.f32.mrb[0].mxu0
      %670 = vmatprep.mubr.bf16.mxu0 0
      %671 = vmatmul.mubr.bf16.gmra.mrb[0].mxu0 %v535
      %v672 = vpop.f32.mrb[0].mxu0
      %v673 = vadd.f32 %v541, %v672
      %v674 = vpop.f32.mrb[0].mxu0
      %v675 = vpop.f32.mrb[0].mxu0
      %v676 = vadd.f32 %v541, %v675
      %v677 = vpop.f32.mrb[0].mxu0
      %678 = vmatprep.mubr.bf16.mxu0 0
      %679 = vmatmul.mubr.bf16.gmra.mrb[0].mxu0 %v536
      %v680 = vpop.f32.mrb[0].mxu0
      %v681 = vadd.f32 %v541, %v680
      %v682 = vpop.f32.mrb[0].mxu0
      %v683 = vpop.f32.mrb[0].mxu0
      %v684 = vadd.f32 %v541, %v683
      %v685 = vpop.f32.mrb[0].mxu0
      %686 = vdwg.mxu0
      %v687 = vlaneseq
      %v688 = vand.u32 %v687, 127
      %vm689 = vcmp.lt.s32.totalorder %v688, 4
      %v690 = vsel %vm689, %v625, -1e+30
      %v691 = vsel %vm689, %v628, -1e+30
      %v692 = vsel %vm689, %v633, -1e+30
      %v693 = vsel %vm689, %v636, -1e+30
      %v694 = vsel %vm689, %v641, -1e+30
      %v695 = vsel %vm689, %v644, -1e+30
      %v696 = vsel %vm689, %v649, -1e+30
      %v697 = vsel %vm689, %v652, -1e+30
      %v698 = vsel %vm689, %v657, -1e+30
      %v699 = vsel %vm689, %v660, -1e+30
      %v700 = vsel %vm689, %v665, -1e+30
      %v701 = vsel %vm689, %v668, -1e+30
      %v702 = vsel %vm689, %v673, -1e+30
      %v703 = vsel %vm689, %v676, -1e+30
      %v704 = vsel %vm689, %v681, -1e+30
      %v705 = vsel %vm689, %v684, -1e+30
      %706 = vmax.xlane.f32.xlu0 %v690
      %v707 = vpop.xlane.xlu0 %706
      %708 = vmax.xlane.f32.xlu0 %v691
      %v709 = vpop.xlane.xlu0 %708
      %710 = vmax.xlane.f32.xlu0 %v692
      %v711 = vpop.xlane.xlu0 %710
      %712 = vmax.xlane.f32.xlu0 %v693
      %v713 = vpop.xlane.xlu0 %712
      %714 = vmax.xlane.f32.xlu0 %v694
      %v715 = vpop.xlane.xlu0 %714
      %716 = vmax.xlane.f32.xlu0 %v695
      %v717 = vpop.xlane.xlu0 %716
      %718 = vmax.xlane.f32.xlu0 %v696
      %v719 = vpop.xlane.xlu0 %718
      %720 = vmax.xlane.f32.xlu0 %v697
      %v721 = vpop.xlane.xlu0 %720
      %722 = vmax.xlane.f32.xlu0 %v698
      %v723 = vpop.xlane.xlu0 %722
      %724 = vmax.xlane.f32.xlu0 %v699
      %v725 = vpop.xlane.xlu0 %724
      %726 = vmax.xlane.f32.xlu0 %v700
      %v727 = vpop.xlane.xlu0 %726
      %728 = vmax.xlane.f32.xlu0 %v701
      %v729 = vpop.xlane.xlu0 %728
      %730 = vmax.xlane.f32.xlu0 %v702
      %v731 = vpop.xlane.xlu0 %730
      %732 = vmax.xlane.f32.xlu0 %v703
      %v733 = vpop.xlane.xlu0 %732
      %734 = vmax.xlane.f32.xlu0 %v704
      %v735 = vpop.xlane.xlu0 %734
      %736 = vmax.xlane.f32.xlu0 %v705
      %v737 = vpop.xlane.xlu0 %736
      %v738 = vsub.f32 %v690, %v707
      %v739 = vsub.f32 %v691, %v709
      %v740 = vsub.f32 %v692, %v711
      %v741 = vsub.f32 %v693, %v713
      %v742 = vsub.f32 %v694, %v715
      %v743 = vsub.f32 %v695, %v717
      %v744 = vsub.f32 %v696, %v719
      %v745 = vsub.f32 %v697, %v721
      %v746 = vsub.f32 %v698, %v723
      %v747 = vsub.f32 %v699, %v725
      %v748 = vsub.f32 %v700, %v727
      %v749 = vsub.f32 %v701, %v729
      %v750 = vsub.f32 %v702, %v731
      %v751 = vsub.f32 %v703, %v733
      %v752 = vsub.f32 %v704, %v735
      %v753 = vsub.f32 %v705, %v737
      %v754 = vmul.f32 %v738, 1.442695
      %v755 = vpow.pop %v754
      %v756 = vmul.f32 %v739, 1.442695
      %v757 = vpow.pop %v756
      %v758 = vmul.f32 %v740, 1.442695
      %v759 = vpow.pop %v758
      %v760 = vmul.f32 %v741, 1.442695
      %v761 = vpow.pop %v760
      %v762 = vmul.f32 %v742, 1.442695
      %v763 = vpow.pop %v762
      %v764 = vmul.f32 %v743, 1.442695
      %v765 = vpow.pop %v764
      %v766 = vmul.f32 %v744, 1.442695
      %v767 = vpow.pop %v766
      %v768 = vmul.f32 %v745, 1.442695
      %v769 = vpow.pop %v768
      %v770 = vmul.f32 %v746, 1.442695
      %v771 = vpow.pop %v770
      %v772 = vmul.f32 %v747, 1.442695
      %v773 = vpow.pop %v772
      %v774 = vmul.f32 %v748, 1.442695
      %v775 = vpow.pop %v774
      %v776 = vmul.f32 %v749, 1.442695
      %v777 = vpow.pop %v776
      %v778 = vmul.f32 %v750, 1.442695
      %v779 = vpow.pop %v778
      %v780 = vmul.f32 %v751, 1.442695
      %v781 = vpow.pop %v780
      %v782 = vmul.f32 %v752, 1.442695
      %v783 = vpow.pop %v782
      %v784 = vmul.f32 %v753, 1.442695
      %v785 = vpow.pop %v784
      %786 = vadd.xlane.f32.xlu0 %v755
      %v787 = vpop.xlane.xlu0 %786
      %788 = vadd.xlane.f32.xlu0 %v757
      %v789 = vpop.xlane.xlu0 %788
      %790 = vadd.xlane.f32.xlu0 %v759
      %v791 = vpop.xlane.xlu0 %790
      %792 = vadd.xlane.f32.xlu0 %v761
      %v793 = vpop.xlane.xlu0 %792
      %794 = vadd.xlane.f32.xlu0 %v763
      %v795 = vpop.xlane.xlu0 %794
      %796 = vadd.xlane.f32.xlu0 %v765
      %v797 = vpop.xlane.xlu0 %796
      %798 = vadd.xlane.f32.xlu0 %v767
      %v799 = vpop.xlane.xlu0 %798
      %800 = vadd.xlane.f32.xlu0 %v769
      %v801 = vpop.xlane.xlu0 %800
      %802 = vadd.xlane.f32.xlu0 %v771
      %v803 = vpop.xlane.xlu0 %802
      %804 = vadd.xlane.f32.xlu0 %v773
      %v805 = vpop.xlane.xlu0 %804
      %806 = vadd.xlane.f32.xlu0 %v775
      %v807 = vpop.xlane.xlu0 %806
      %808 = vadd.xlane.f32.xlu0 %v777
      %v809 = vpop.xlane.xlu0 %808
      %810 = vadd.xlane.f32.xlu0 %v779
      %v811 = vpop.xlane.xlu0 %810
      %812 = vadd.xlane.f32.xlu0 %v781
      %v813 = vpop.xlane.xlu0 %812
      %814 = vadd.xlane.f32.xlu0 %v783
      %v815 = vpop.xlane.xlu0 %814
      %816 = vadd.xlane.f32.xlu0 %v785
      %v817 = vpop.xlane.xlu0 %816
      %v818 = vrcp.pop %v787
      %v819 = vmul.f32 %v755, %v818
      %v820 = vrcp.pop %v789
      %v821 = vmul.f32 %v757, %v820
      %v822 = vrcp.pop %v791
      %v823 = vmul.f32 %v759, %v822
      %v824 = vrcp.pop %v793
      %v825 = vmul.f32 %v761, %v824
      %v826 = vrcp.pop %v795
      %v827 = vmul.f32 %v763, %v826
      %v828 = vrcp.pop %v797
      %v829 = vmul.f32 %v765, %v828
      %v830 = vrcp.pop %v799
      %v831 = vmul.f32 %v767, %v830
      %v832 = vrcp.pop %v801
      %v833 = vmul.f32 %v769, %v832
      %v834 = vrcp.pop %v803
      %v835 = vmul.f32 %v771, %v834
      %v836 = vrcp.pop %v805
      %v837 = vmul.f32 %v773, %v836
      %v838 = vrcp.pop %v807
      %v839 = vmul.f32 %v775, %v838
      %v840 = vrcp.pop %v809
      %v841 = vmul.f32 %v777, %v840
      %v842 = vrcp.pop %v811
      %v843 = vmul.f32 %v779, %v842
      %v844 = vrcp.pop %v813
      %v845 = vmul.f32 %v781, %v844
      %v846 = vrcp.pop %v815
      %v847 = vmul.f32 %v783, %v846
      %v848 = vrcp.pop %v817
      %v849 = vmul.f32 %v785, %v848
      %850 = vst [vmem:[%s145] sm:$0xff] %v819
      %851 = vst [vmem:[%s145 + $0x8] sm:$0xff] %v821
      %852 = vst [vmem:[%s145 + $0x10] sm:$0xff] %v823
      %853 = vst [vmem:[%s145 + $0x18] sm:$0xff] %v825
      %854 = vst [vmem:[%s145 + $0x20] sm:$0xff] %v827
      %855 = vst [vmem:[%s145 + $0x28] sm:$0xff] %v829
      %856 = vst [vmem:[%s145 + $0x30] sm:$0xff] %v831
      %857 = vst [vmem:[%s145 + $0x38] sm:$0xff] %v833
      %858 = vst [vmem:[%s145 + $0x40] sm:$0xff] %v835
      %859 = vst [vmem:[%s145 + $0x48] sm:$0xff] %v837
      %860 = vst [vmem:[%s145 + $0x50] sm:$0xff] %v839
      %861 = vst [vmem:[%s145 + $0x58] sm:$0xff] %v841
      %862 = vst [vmem:[%s145 + $0x60] sm:$0xff] %v843
      %863 = vst [vmem:[%s145 + $0x68] sm:$0xff] %v845
      %864 = vst [vmem:[%s145 + $0x70] sm:$0xff] %v847
      %865 = vst [vmem:[%s145 + $0x78] sm:$0xff] %v849
      %s866 = smul.u32 16, %s13
      %p867 = scmp.lt.s32.totalorder %s866, 31
      %s868 = scalar_select %p867, %s866, 31
      %s869 = smul.addr %s868, 8
      %s870 = scalar_lea.vmem %s2, %s869
      // Predicated region
      $region29: #{actor_forward.1} parent=27 // pred_check
        %p871 = pneg %p78
      $region30: #{actor_forward.1} parent=27 // pred_check_branch
        %873 = sbr.rel (%p871) target = $region32
      $region31: #{actor_forward.1} parent=27 // pred_region
        %s874 = smul.u32 16, %s13
      $region32: #{actor_forward.1} parent=27 // pred_fallthru
        _
    $region28: #{actor_forward.1} parent=5 // pred_fallthru
      _
    %p875 = scmp.le.s32.totalorder 2, %s8
    // Predicated region
    $region33: #{actor_forward.1} parent=5 // pred_check
      %p876 = pneg %p875
    $region34: #{actor_forward.1} parent=5 // pred_check_branch
      %878 = sbr.rel (%p876) target = $region36
    $region35: #{actor_forward.1} parent=5 // pred_region
      %s879 = ssub.s32 %s8, 2
      // Predicated region
      $region37: #{actor_forward.1} parent=35 // pred_check
        %p880 = pneg %p84
      $region38: #{actor_forward.1} parent=35 // pred_check_branch
        %882 = sbr.rel (%p880) target = $region40
      $region39: #{actor_forward.1} parent=35 // pred_region
        %s883 = smul.u32 16, %s14
        %p884 = scmp.lt.s32.totalorder %s883, 31
        %s885 = scalar_select %p884, %s883, 31
        %s886 = smul.addr %s885, 8
        %s887 = scalar_lea.vmem %s2, %s886
      $region40: #{actor_forward.1} parent=35 // pred_fallthru
        _
    $region36: #{actor_forward.1} parent=5 // pred_fallthru
      _
  $region6: #{actor_forward.1} parent=0 // loop_footer
    %s12 = sadd.s32 1, %s8
  $region7: #{actor_forward.1} parent=0 // loop_footer_branch
    %7 = sbr.rel target = $region3
  $region8: #{actor_forward.1} parent=0 // loop_exit
    _

</llo_original>
